<compile_context>
chip_gen: v6e
topology: v6e:2x2x1
jax: 0.10.0
libtpu: 0.0.40
codegen_flags: <defaults>
</compile_context>

<pallas_src>
from functools import partial

import jax
import jax.numpy as jnp
from jax.experimental import pallas as pl
from jax.experimental.pallas import tpu as pltpu


def node_apply_kernel(x_ref, w_ref, b_ref, o_ref):
    # x_ref: [tm, K_pad]  w_ref: [K_pad, tn]  b_ref: [1, tn]  o_ref: [tm, tn]
    h = jnp.dot(x_ref[...], w_ref[...], preferred_element_type=jnp.float32)
    h = h + b_ref[...].astype(jnp.float32)   # f32 epilogue: bias broadcast over rows
    h = jnp.maximum(h, 0.0)                  # activation = relu
    o_ref[...] = h.astype(o_ref.dtype)


def _round_up(x, m):
    return (x + m - 1) // m * m


def _pick_tm(n_rows, k_pad, tn, x_bytes, w_bytes, out_bytes, max_tm):
    """Largest row tile (multiple of 8) whose double-buffered footprint fits."""
    budget = 48 << 20  # leave headroom below 64 MiB physical VMEM (v7x)
    tm = min(max_tm, _round_up(n_rows, 8))
    tm = max(8, _round_up(tm, 8))
    while tm > 8:
        foot = 2 * (tm * k_pad * x_bytes      # streamed x tile (double-buffered)
                    + tm * tn * out_bytes     # streamed output tile
                    + k_pad * tn * w_bytes    # weight tile
                    + 8 * tn * 4)             # bias tile (padded sublane)
        if foot <= budget:
            break
        tm = max(8, tm // 2)
    return tm


@partial(jax.jit, static_argnames=("max_tm", "max_tn", "compute_dtype"))
def node_apply(x, weight, bias, *, max_tm=1024, max_tn=2048, compute_dtype=None):
    """GCN node-apply: relu(x @ weight.T + bias).

    x:      [N, in_feats]
    weight: [out_feats, in_feats]  (PyTorch nn.Linear layout)
    bias:   [out_feats]
    """
    N, in_feats = x.shape
    out_feats = weight.shape[0]
    out_dtype = x.dtype

    if compute_dtype is not None:
        x = x.astype(compute_dtype)
        weight = weight.astype(compute_dtype)

    # Lane-dense padding: feature dims -> multiples of 128.
    k_pad = _round_up(in_feats, 128)
    tn = min(_round_up(out_feats, 128), _round_up(max_tn, 128))
    n_pad = _round_up(out_feats, tn)          # guarantees n_pad % tn == 0
    grid_n = n_pad // tn

    tm = _pick_tm(
        N, k_pad, tn,
        x.dtype.itemsize, weight.dtype.itemsize, jnp.dtype(out_dtype).itemsize,
        max_tm,
    )
    m_pad = _round_up(N, tm)
    grid_m = m_pad // tm

    # Pad / pre-transpose once (fused into the jit prologue by XLA).
    x_p = jnp.zeros((m_pad, k_pad), x.dtype).at[:N, :in_feats].set(x)
    w_t = jnp.zeros((k_pad, n_pad), weight.dtype).at[:in_feats, :out_feats].set(weight.T)
    b2d = jnp.zeros((1, n_pad), jnp.float32).at[0, :out_feats].set(bias.astype(jnp.float32))

    # Explicit VMEM budget derived from the actual tile footprint (+ headroom).
    bytes_x = tm * k_pad * x_p.dtype.itemsize
    bytes_o = tm * tn * jnp.dtype(out_dtype).itemsize
    bytes_w = k_pad * tn * w_t.dtype.itemsize
    bytes_b = 8 * tn * 4
    vmem_bytes = 2 * (bytes_x + bytes_o + bytes_w + bytes_b) + (2 << 20)
    vmem_bytes = int(min(vmem_bytes, 64 << 20))   # also fits v7x (64 MiB physical)

    out_p = pl.pallas_call(
        node_apply_kernel,
        out_shape=jax.ShapeDtypeStruct((m_pad, n_pad), out_dtype),
        grid_spec=pltpu.PrefetchScalarGridSpec(
            num_scalar_prefetch=0,
            grid=(grid_m, grid_n),                                  # N innermost
            in_specs=[
                pl.BlockSpec((tm, k_pad), lambda i, j: (i, 0)),     # x: resident per row tile
                pl.BlockSpec((k_pad, tn), lambda i, j: (0, j)),     # W^T: streams over cols
                pl.BlockSpec((1, tn), lambda i, j: (0, j)),         # bias: streams over cols
            ],
            out_specs=pl.BlockSpec((tm, tn), lambda i, j: (i, j)),
        ),
        compiler_params=pltpu.CompilerParams(
            dimension_semantics=("parallel", "parallel"),
            vmem_limit_bytes=vmem_bytes,
        ),
    )(x_p, w_t, b2d)

    # Slice away row / lane padding.
    return out_p[:N, :out_feats]


if __name__ == "__main__":
    key = jax.random.PRNGKey(0)
    kx, kw, kb = jax.random.split(key, 3)

    # Small synthetic graph: ragged node count to exercise the padded path.
    N, in_feats, out_feats = 130, 32, 64

    x = jax.random.normal(kx, (N, in_feats), dtype=jnp.float32)
    # deterministic param init (matches nn.Linear shapes: W [out, in], b [out])
    bound = 1.0 / (in_feats ** 0.5)
    weight = jax.random.uniform(kw, (out_feats, in_feats), jnp.float32, -bound, bound)
    bias = jax.random.uniform(kb, (out_feats,), jnp.float32, -bound, bound)

    out = node_apply(x, weight, bias)
    out = jax.block_until_ready(out)

    ref = jnp.maximum(x @ weight.T + bias, 0.0)
    assert out.shape == (N, out_feats)
    assert jnp.allclose(out, ref, atol=1e-5, rtol=1e-5), "mismatch vs reference (small)"

    # Second shape: ragged rows + non-multiple-of-128 feature dims (tiled path).
    N2, in2, out2 = 1000, 200, 300
    k2 = jax.random.split(key, 6)
    x2 = jax.random.normal(k2[3], (N2, in2), dtype=jnp.float32)
    b2bound = 1.0 / (in2 ** 0.5)
    w2 = jax.random.uniform(k2[4], (out2, in2), jnp.float32, -b2bound, b2bound)
    b2 = jax.random.uniform(k2[5], (out2,), jnp.float32, -b2bound, b2bound)

    out2_v = jax.block_until_ready(node_apply(x2, w2, b2))
    ref2 = jnp.maximum(x2 @ w2.T + b2, 0.0)
    assert out2_v.shape == (N2, out2)
    assert jnp.allclose(out2_v, ref2, atol=1e-4, rtol=1e-4), "mismatch vs reference (tiled)"

    print("KERNEL_OK")
</pallas_src>

<mosaic_0001>
module attributes {stable_mosaic.version = 11 : i64} {
  func.func @node_apply_kernel(%arg0: i32, %arg1: i32, %arg2: memref<136x128xf32, #tpu.memory_space<vmem>>, %arg3: memref<128x128xf32, #tpu.memory_space<vmem>>, %arg4: memref<1x128xf32, #tpu.memory_space<vmem>>, %arg5: memref<136x128xf32, #tpu.memory_space<vmem>>) attributes {dimension_semantics = [#tpu.dimension_semantics<parallel>, #tpu.dimension_semantics<parallel>], iteration_bounds = array<i64: 1, 1>, scalar_prefetch = 0 : i64, scratch_operands = 0 : i64, tpu.core_type = #tpu.core_type<tc>, window_params = [{transform_indices = @transform_0, window_bounds = array<i64: 136, 128>}, {transform_indices = @transform_1, window_bounds = array<i64: 128, 128>}, {transform_indices = @transform_2, window_bounds = array<i64: 1, 128>}, {transform_indices = @transform_3, window_bounds = array<i64: 136, 128>}]} {
    %c0 = arith.constant 0 : index
    %c0_0 = arith.constant 0 : index
    %0 = vector.load %arg2[%c0, %c0_0] : memref<136x128xf32, #tpu.memory_space<vmem>>, vector<136x128xf32>
    %c0_1 = arith.constant 0 : index
    %c0_2 = arith.constant 0 : index
    %1 = vector.load %arg3[%c0_1, %c0_2] : memref<128x128xf32, #tpu.memory_space<vmem>>, vector<128x128xf32>
    %cst = arith.constant dense<0.000000e+00> : vector<136x128xf32>
    %2 = tpu.matmul %0, %1, %cst {dimension_numbers = #tpu.dot_dimension_numbers<[1], [0], [0], [1], [0, 0, 1, 1], [], []>} : vector<136x128xf32>, vector<128x128xf32>, vector<136x128xf32> -> vector<136x128xf32>
    %c0_3 = arith.constant 0 : index
    %c0_4 = arith.constant 0 : index
    %3 = vector.load %arg4[%c0_3, %c0_4] : memref<1x128xf32, #tpu.memory_space<vmem>>, vector<1x128xf32>
    %4 = vector.broadcast %3 : vector<1x128xf32> to vector<136x128xf32>
    %5 = arith.addf %2, %4 : vector<136x128xf32>
    %cst_5 = arith.constant 0.000000e+00 : f32
    %6 = vector.broadcast %cst_5 : f32 to vector<136x128xf32>
    %7 = arith.maximumf %5, %6 : vector<136x128xf32>
    %c0_6 = arith.constant 0 : index
    %c0_7 = arith.constant 0 : index
    %8 = vector.load %arg5[%c0_6, %c0_7] : memref<136x128xf32, #tpu.memory_space<vmem>>, vector<136x128xf32>
    tpu.vector_store %arg5[%c0_6, %c0_7], %7 {strides = array<i32>} : memref<136x128xf32, #tpu.memory_space<vmem>>, vector<136x128xf32>,
    return
  }
  func.func @transform_0(%arg0: i32, %arg1: i32) -> (i32, i32) {
    %c0_i32 = arith.constant 0 : i32
    %c0_i32_0 = arith.constant 0 : i32
    return %arg0, %c0_i32 : i32, i32
  }
  func.func @transform_1(%arg0: i32, %arg1: i32) -> (i32, i32) {
    %c0_i32 = arith.constant 0 : i32
    %c0_i32_0 = arith.constant 0 : i32
    return %c0_i32, %arg1 : i32, i32
  }
  func.func @transform_2(%arg0: i32, %arg1: i32) -> (i32, i32) {
    %c0_i32 = arith.constant 0 : i32
    %c0_i32_0 = arith.constant 0 : i32
    return %c0_i32, %arg1 : i32, i32
  }
  func.func @transform_3(%arg0: i32, %arg1: i32) -> (i32, i32) {
    %c0_i32 = arith.constant 0 : i32
    return %arg0, %arg1 : i32, i32
  }
}

</mosaic_0001>

<llo_original>
// kernel: node_apply.1
$region0: #{node_apply.1}
  #allocation0 [shape = 'u32[]', space=smem, size = 0x4, offset = 0x4, fixed_abs, tag = 'smem constant byte address 0x4 - core index']
  #allocation1 [shape = 'u32[144,128]{1,0:T(1,128)}', space=vmem, size = 0x12000, scoped, tag = 'internal scratch']
  %s0 = inlined_call_operand.vmem [shape: f32[136,128], index: 0, kind: input, shape index: {}]
  %s1 = inlined_call_operand.vmem [shape: f32[128,128], index: 1, kind: input, shape index: {}]
  %s2 = inlined_call_operand.vmem [shape: f32[1,128], index: 2, kind: input, shape index: {}]
  %s3 = inlined_call_operand.vmem [shape: f32[136,128], index: 3, kind: output, shape index: {}]
  %s4 = sld [smem:[#allocation0]]
  $region22: #{node_apply.1} parent=0
    _
  %s6 = ssub.s32 1, %s4
  %s7 = scalar_select 0, %s6, %s4
  // Predicated region
  $region2: #{node_apply.1} parent=0 // pred_check
    _
  $region3: #{node_apply.1} parent=0 // pred_check_branch
    %9 = sbr.rel (0) target = $region5
  $region4: #{node_apply.1} parent=0 // pred_region
    _
  $region5: #{node_apply.1} parent=0 // pred_fallthru
    _
  // Predicated region
  $region6: #{node_apply.1} parent=0 // pred_check
    _
  $region7: #{node_apply.1} parent=0 // pred_check_branch
    %11 = sbr.rel (0) target = $region9
  $region8: #{node_apply.1} parent=0 // pred_region
    _
  $region9: #{node_apply.1} parent=0 // pred_fallthru
    _
  // Predicated region
  $region10: #{node_apply.1} parent=0 // pred_check
    _
  $region11: #{node_apply.1} parent=0 // pred_check_branch
    %13 = sbr.rel (0) target = $region13
  $region12: #{node_apply.1} parent=0 // pred_region
    _
  $region13: #{node_apply.1} parent=0 // pred_fallthru
    _
  %v14 = vld [vmem:[%s0] sm:$0xff]
  %v15 = vld [vmem:[%s0 + $0x8] sm:$0xff]
  %v16 = vld [vmem:[%s0 + $0x10] sm:$0xff]
  %v17 = vld [vmem:[%s0 + $0x18] sm:$0xff]
  %v18 = vld [vmem:[%s0 + $0x20] sm:$0xff]
  %v19 = vld [vmem:[%s0 + $0x28] sm:$0xff]
  %v20 = vld [vmem:[%s0 + $0x30] sm:$0xff]
  %v21 = vld [vmem:[%s0 + $0x38] sm:$0xff]
  %v22 = vld [vmem:[%s0 + $0x40] sm:$0xff]
  %v23 = vld [vmem:[%s0 + $0x48] sm:$0xff]
  %v24 = vld [vmem:[%s0 + $0x50] sm:$0xff]
  %v25 = vld [vmem:[%s0 + $0x58] sm:$0xff]
  %v26 = vld [vmem:[%s0 + $0x60] sm:$0xff]
  %v27 = vld [vmem:[%s0 + $0x68] sm:$0xff]
  %v28 = vld [vmem:[%s0 + $0x70] sm:$0xff]
  %v29 = vld [vmem:[%s0 + $0x78] sm:$0xff]
  %v30 = vld [vmem:[%s0 + $0x80] sm:$0xff]
  %v31 = vld [vmem:[%s1] sm:$0xff]
  %v32 = vld [vmem:[%s1 + $0x8] sm:$0xff]
  %v33 = vld [vmem:[%s1 + $0x10] sm:$0xff]
  %v34 = vld [vmem:[%s1 + $0x18] sm:$0xff]
  %v35 = vld [vmem:[%s1 + $0x20] sm:$0xff]
  %v36 = vld [vmem:[%s1 + $0x28] sm:$0xff]
  %v37 = vld [vmem:[%s1 + $0x30] sm:$0xff]
  %v38 = vld [vmem:[%s1 + $0x38] sm:$0xff]
  %v39 = vld [vmem:[%s1 + $0x40] sm:$0xff]
  %v40 = vld [vmem:[%s1 + $0x48] sm:$0xff]
  %v41 = vld [vmem:[%s1 + $0x50] sm:$0xff]
  %v42 = vld [vmem:[%s1 + $0x58] sm:$0xff]
  %v43 = vld [vmem:[%s1 + $0x60] sm:$0xff]
  %v44 = vld [vmem:[%s1 + $0x68] sm:$0xff]
  %v45 = vld [vmem:[%s1 + $0x70] sm:$0xff]
  %v46 = vld [vmem:[%s1 + $0x78] sm:$0xff]
  %v47 = vld [vmem:[%s2] sm:$0x1]
  %v49 = vlaneseq
  %v50 = vshrl.u32 %v49, 7
  %v51 = vsub.s32 0, %v50
  %v52 = vrot.slane %v47, %v51
  %54 = vmatprep.subr.mxu0 0.0
  %55 = vmatpush1.msra.mxu0 %v46
  %56 = vmatprep.subr.mxu0 0.0
  %57 = vmatpush1.msra.mxu0 %v45
  %58 = vmatprep.subr.mxu0 0.0
  %59 = vmatpush1.msra.mxu0 %v44
  %60 = vmatprep.subr.mxu0 0.0
  %61 = vmatpush1.msra.mxu0 %v43
  %62 = vmatprep.subr.mxu0 0.0
  %63 = vmatpush1.msra.mxu0 %v42
  %64 = vmatprep.subr.mxu0 0.0
  %65 = vmatpush1.msra.mxu0 %v41
  %66 = vmatprep.subr.mxu0 0.0
  %67 = vmatpush1.msra.mxu0 %v40
  %68 = vmatprep.subr.mxu0 0.0
  %69 = vmatpush1.msra.mxu0 %v39
  %70 = vmatprep.subr.mxu0 0.0
  %71 = vmatpush1.msra.mxu0 %v38
  %72 = vmatprep.subr.mxu0 0.0
  %73 = vmatpush1.msra.mxu0 %v37
  %74 = vmatprep.subr.mxu0 0.0
  %75 = vmatpush1.msra.mxu0 %v36
  %76 = vmatprep.subr.mxu0 0.0
  %77 = vmatpush1.msra.mxu0 %v35
  %78 = vmatprep.subr.mxu0 0.0
  %79 = vmatpush1.msra.mxu0 %v34
  %80 = vmatprep.subr.mxu0 0.0
  %81 = vmatpush1.msra.mxu0 %v33
  %82 = vmatprep.subr.mxu0 0.0
  %83 = vmatpush1.msra.mxu0 %v32
  %84 = vmatprep.subr.mxu0 0.0
  %85 = vmatpush1.msra.mxu0 %v31
  %86 = vmatprep.subr.mxu0 0.0
  %87 = vmatpush2.msra.mxu0 0.0
  %88 = vmatprep.subr.mxu0 0.0
  %89 = vmatpush2.msra.mxu0 0.0
  %90 = vmatprep.subr.mxu0 0.0
  %91 = vmatpush2.msra.mxu0 0.0
  %92 = vmatprep.subr.mxu0 0.0
  %93 = vmatpush2.msra.mxu0 0.0
  %94 = vmatprep.subr.mxu0 0.0
  %95 = vmatpush2.msra.mxu0 0.0
  %96 = vmatprep.subr.mxu0 0.0
  %97 = vmatpush2.msra.mxu0 0.0
  %98 = vmatprep.subr.mxu0 0.0
  %99 = vmatpush2.msra.mxu0 0.0
  %100 = vmatprep.subr.mxu0 0.0
  %101 = vmatpush2.msra.mxu0 0.0
  %102 = vmatprep.subr.mxu0 0.0
  %103 = vmatpush2.msra.mxu0 0.0
  %104 = vmatprep.subr.mxu0 0.0
  %105 = vmatpush2.msra.mxu0 0.0
  %106 = vmatprep.subr.mxu0 0.0
  %107 = vmatpush2.msra.mxu0 0.0
  %108 = vmatprep.subr.mxu0 0.0
  %109 = vmatpush2.msra.mxu0 0.0
  %110 = vmatprep.subr.mxu0 0.0
  %111 = vmatpush2.msra.mxu0 0.0
  %112 = vmatprep.subr.mxu0 0.0
  %113 = vmatpush2.msra.mxu0 0.0
  %114 = vmatprep.subr.mxu0 0.0
  %115 = vmatpush2.msra.mxu0 0.0
  %116 = vmatprep.subr.mxu0 0.0
  %117 = vmatpush2.msra.mxu0 0.0
  %118 = vmatprep.mubr.f32.mxu0 0.0
  %119 = vmatmul.mubr.f32.gmra.mxu0 %v14
  %v120 = vpop.f32.mrf.mxu0
  %v121 = vadd.f32 %v52, %v120
  %v122 = vpop.f32.mrf.mxu0
  %123 = vmatprep.mubr.f32.mxu0 0.0
  %124 = vmatmul.mubr.f32.gmra.mxu0 %v15
  %v125 = vpop.f32.mrf.mxu0
  %v126 = vadd.f32 %v52, %v125
  %v127 = vpop.f32.mrf.mxu0
  %128 = vmatprep.mubr.f32.mxu0 0.0
  %129 = vmatmul.mubr.f32.gmra.mxu0 %v16
  %v130 = vpop.f32.mrf.mxu0
  %v131 = vadd.f32 %v52, %v130
  %v132 = vpop.f32.mrf.mxu0
  %133 = vmatprep.mubr.f32.mxu0 0.0
  %134 = vmatmul.mubr.f32.gmra.mxu0 %v17
  %v135 = vpop.f32.mrf.mxu0
  %v136 = vadd.f32 %v52, %v135
  %v137 = vpop.f32.mrf.mxu0
  %138 = vmatprep.mubr.f32.mxu0 0.0
  %139 = vmatmul.mubr.f32.gmra.mxu0 %v18
  %v140 = vpop.f32.mrf.mxu0
  %v141 = vadd.f32 %v52, %v140
  %v142 = vpop.f32.mrf.mxu0
  %143 = vmatprep.mubr.f32.mxu0 0.0
  %144 = vmatmul.mubr.f32.gmra.mxu0 %v19
  %v145 = vpop.f32.mrf.mxu0
  %v146 = vadd.f32 %v52, %v145
  %v147 = vpop.f32.mrf.mxu0
  %148 = vmatprep.mubr.f32.mxu0 0.0
  %149 = vmatmul.mubr.f32.gmra.mxu0 %v20
  %v150 = vpop.f32.mrf.mxu0
  %v151 = vadd.f32 %v52, %v150
  %v152 = vpop.f32.mrf.mxu0
  %153 = vmatprep.mubr.f32.mxu0 0.0
  %154 = vmatmul.mubr.f32.gmra.mxu0 %v21
  %v155 = vpop.f32.mrf.mxu0
  %v156 = vadd.f32 %v52, %v155
  %v157 = vpop.f32.mrf.mxu0
  %158 = vmatprep.mubr.f32.mxu0 0.0
  %159 = vmatmul.mubr.f32.gmra.mxu0 %v22
  %v160 = vpop.f32.mrf.mxu0
  %v161 = vadd.f32 %v52, %v160
  %v162 = vpop.f32.mrf.mxu0
  %163 = vmatprep.mubr.f32.mxu0 0.0
  %164 = vmatmul.mubr.f32.gmra.mxu0 %v23
  %v165 = vpop.f32.mrf.mxu0
  %v166 = vadd.f32 %v52, %v165
  %v167 = vpop.f32.mrf.mxu0
  %168 = vmatprep.mubr.f32.mxu0 0.0
  %169 = vmatmul.mubr.f32.gmra.mxu0 %v24
  %v170 = vpop.f32.mrf.mxu0
  %v171 = vadd.f32 %v52, %v170
  %v172 = vpop.f32.mrf.mxu0
  %173 = vmatprep.mubr.f32.mxu0 0.0
  %174 = vmatmul.mubr.f32.gmra.mxu0 %v25
  %v175 = vpop.f32.mrf.mxu0
  %v176 = vadd.f32 %v52, %v175
  %v177 = vpop.f32.mrf.mxu0
  %178 = vmatprep.mubr.f32.mxu0 0.0
  %179 = vmatmul.mubr.f32.gmra.mxu0 %v26
  %v180 = vpop.f32.mrf.mxu0
  %v181 = vadd.f32 %v52, %v180
  %v182 = vpop.f32.mrf.mxu0
  %183 = vmatprep.mubr.f32.mxu0 0.0
  %184 = vmatmul.mubr.f32.gmra.mxu0 %v27
  %v185 = vpop.f32.mrf.mxu0
  %v186 = vadd.f32 %v52, %v185
  %v187 = vpop.f32.mrf.mxu0
  %188 = vmatprep.mubr.f32.mxu0 0.0
  %189 = vmatmul.mubr.f32.gmra.mxu0 %v28
  %v190 = vpop.f32.mrf.mxu0
  %v191 = vadd.f32 %v52, %v190
  %v192 = vpop.f32.mrf.mxu0
  %193 = vmatprep.mubr.f32.mxu0 0.0
  %194 = vmatmul.mubr.f32.gmra.mxu0 %v29
  %v195 = vpop.f32.mrf.mxu0
  %v196 = vadd.f32 %v52, %v195
  %v197 = vpop.f32.mrf.mxu0
  %198 = vmatprep.mubr.f32.mxu0 0.0
  %199 = vmatmul.mubr.f32.gmra.mxu0 %v30
  %v200 = vpop.f32.mrf.mxu0
  %v201 = vadd.f32 %v52, %v200
  %v202 = vpop.f32.mrf.mxu0
  %203 = vdwg.mxu0
  %v204 = vmax.f32 %v121, 0.0
  %v205 = vmax.f32 %v126, 0.0
  %v206 = vmax.f32 %v131, 0.0
  %v207 = vmax.f32 %v136, 0.0
  %v208 = vmax.f32 %v141, 0.0
  %v209 = vmax.f32 %v146, 0.0
  %v210 = vmax.f32 %v151, 0.0
  %v211 = vmax.f32 %v156, 0.0
  %v212 = vmax.f32 %v161, 0.0
  %v213 = vmax.f32 %v166, 0.0
  %v214 = vmax.f32 %v171, 0.0
  %v215 = vmax.f32 %v176, 0.0
  %v216 = vmax.f32 %v181, 0.0
  %v217 = vmax.f32 %v186, 0.0
  %v218 = vmax.f32 %v191, 0.0
  %v219 = vmax.f32 %v196, 0.0
  %v220 = vmax.f32 %v201, 0.0
  %221 = vst [vmem:[%s3] sm:$0xff] %v204
  %222 = vst [vmem:[%s3 + $0x8] sm:$0xff] %v205
  %223 = vst [vmem:[%s3 + $0x10] sm:$0xff] %v206
  %224 = vst [vmem:[%s3 + $0x18] sm:$0xff] %v207
  %225 = vst [vmem:[%s3 + $0x20] sm:$0xff] %v208
  %226 = vst [vmem:[%s3 + $0x28] sm:$0xff] %v209
  %227 = vst [vmem:[%s3 + $0x30] sm:$0xff] %v210
  %228 = vst [vmem:[%s3 + $0x38] sm:$0xff] %v211
  %229 = vst [vmem:[%s3 + $0x40] sm:$0xff] %v212
  %230 = vst [vmem:[%s3 + $0x48] sm:$0xff] %v213
  %231 = vst [vmem:[%s3 + $0x50] sm:$0xff] %v214
  %232 = vst [vmem:[%s3 + $0x58] sm:$0xff] %v215
  %233 = vst [vmem:[%s3 + $0x60] sm:$0xff] %v216
  %234 = vst [vmem:[%s3 + $0x68] sm:$0xff] %v217
  %235 = vst [vmem:[%s3 + $0x70] sm:$0xff] %v218
  %236 = vst [vmem:[%s3 + $0x78] sm:$0xff] %v219
  %237 = vst [vmem:[%s3 + $0x80] sm:$0xff] %v220
  // Predicated region
  $region14: #{node_apply.1} parent=0 // pred_check
    _
  $region15: #{node_apply.1} parent=0 // pred_check_branch
    %239 = sbr.rel (0) target = $region17
  $region16: #{node_apply.1} parent=0 // pred_region
    _
  $region17: #{node_apply.1} parent=0 // pred_fallthru
    _
  // Predicated region
  $region18: #{node_apply.1} parent=0 // pred_check
    _
  $region19: #{node_apply.1} parent=0 // pred_check_branch
    %241 = sbr.rel (0) target = $region21
  $region20: #{node_apply.1} parent=0 // pred_region
    _
  $region21: #{node_apply.1} parent=0 // pred_fallthru
    _

</llo_original>
